<compile_context>
chip_gen: v5e
topology: v5e:2x2
jax: 0.10.0
libtpu: 0.0.40
codegen_flags: <defaults>
</compile_context>

<pallas_src>
import functools

import jax
import jax.numpy as jnp
from jax.experimental import pallas as pl
from jax.experimental.pallas import tpu as pltpu

EPS = 1e-5


def _round_up(v, m):
    return (v + m - 1) // m * m


def _hw_vmem_limit():
    """Scoped-VMEM limit derived from the device, leaving compiler headroom."""
    cap = 64 << 20
    try:
        info = pltpu.get_tpu_info()
        cap = int(getattr(info, "vmem_capacity_bytes", cap)) or cap
    except Exception:
        pass
    # v5e/v6e (128 MiB physical) -> 112 MiB; v7x (64 MiB physical) -> 48 MiB.
    return int(cap - max(16 << 20, cap // 8))


def _cparams(vmem_limit, **kw):
    return pltpu.CompilerParams(vmem_limit_bytes=int(vmem_limit), **kw)


# ---------------------------------------------------------------------------
# Path 1a: lane-packed single resident block (feat < 128, feat | 128).
# x is viewed (N, F) -> (N/k, k*F) with k = 128 // F so loads/stores are
# lane-dense; per-feature stats reduce the k row-groups with log2(k) cyclic
# lane rotations (XLU, cheap).
# ---------------------------------------------------------------------------
def _bn_packed_kernel(x_ref, gamma_ref, beta_ref, o_ref, *, n_rows, feat, groups):
    x = x_ref[...].astype(jnp.float32)                 # (N/k, k*F)
    s = jnp.sum(x, axis=0, keepdims=True)              # (1, k*F)
    sq = jnp.sum(x * x, axis=0, keepdims=True)
    off = feat
    while off < feat * groups:                         # cyclic all-reduce over groups
        s = s + pltpu.roll(s, shift=off, axis=1)
        sq = sq + pltpu.roll(sq, shift=off, axis=1)
        off *= 2
    inv_n = 1.0 / float(n_rows)
    mean = s * inv_n
    var = jnp.maximum(sq * inv_n - mean * mean, 0.0)   # biased variance
    inv_std = jax.lax.rsqrt(var + EPS)
    scale = gamma_ref[...].astype(jnp.float32) * inv_std
    shift = beta_ref[...].astype(jnp.float32) - mean * scale
    o_ref[...] = (x * scale + shift).astype(o_ref.dtype)


# ---------------------------------------------------------------------------
# Path 1b / Path 2: each block holds a full-N column of features.
# ---------------------------------------------------------------------------
def _bn_col_kernel(x_ref, gamma_ref, beta_ref, o_ref, *, n_rows):
    x = x_ref[...].astype(jnp.float32)                 # (N, tile_f)
    inv_n = 1.0 / float(n_rows)
    mean = jnp.sum(x, axis=0, keepdims=True) * inv_n
    ex2 = jnp.sum(x * x, axis=0, keepdims=True) * inv_n
    var = jnp.maximum(ex2 - mean * mean, 0.0)
    inv_std = jax.lax.rsqrt(var + EPS)
    scale = gamma_ref[...].astype(jnp.float32) * inv_std
    shift = beta_ref[...].astype(jnp.float32) - mean * scale
    o_ref[...] = (x * scale + shift).astype(o_ref.dtype)


# ---------------------------------------------------------------------------
# Path 3, pass 1: per-feature sum / sum-of-squares accumulated over row tiles.
# Ragged last row block is masked in-kernel (no jnp.pad of x needed).
# ---------------------------------------------------------------------------
def _bn_stats_kernel(x_ref, sum_ref, sq_ref, *, rows_total, tile_rows, mask_rows):
    @pl.when(pl.program_id(1) == 0)
    def _():
        sum_ref[...] = jnp.zeros_like(sum_ref)
        sq_ref[...] = jnp.zeros_like(sq_ref)

    x = x_ref[...].astype(jnp.float32)
    if mask_rows:
        row0 = pl.program_id(1) * tile_rows
        rid = jax.lax.broadcasted_iota(jnp.int32, x.shape, 0) + row0
        x = jnp.where(rid < rows_total, x, 0.0)
    sum_ref[...] += jnp.sum(x, axis=0, keepdims=True)
    sq_ref[...] += jnp.sum(x * x, axis=0, keepdims=True)


# Path 3, pass 2: y = x * scale + shift with precomputed per-feature scale/shift.
def _bn_apply_kernel(x_ref, scale_ref, shift_ref, o_ref):
    x = x_ref[...].astype(jnp.float32)
    o_ref[...] = (x * scale_ref[...] + shift_ref[...]).astype(o_ref.dtype)


def batch_norm_point(x, gamma, beta, *, tile_f=None, tile_n=None,
                     vmem_budget_bytes=None):
    """x: (s1, s2, feat); gamma, beta: (feat,). Returns (s1, s2, feat)."""
    s1, s2, f = x.shape
    assert gamma.shape == (f,) and beta.shape == (f,)
    n = s1 * s2
    isz = x.dtype.itemsize
    sub = max(8, 32 // isz)                       # dtype-native sublane multiple
    hw_limit = _hw_vmem_limit()
    budget = hw_limit if vmem_budget_bytes is None else vmem_budget_bytes

    x2d = x.reshape(n, f)                         # contiguous view, no HBM copy

    packable = f < 128 and 128 % f == 0 and n % (128 // f) == 0
    k = 128 // f if packable else 1

    # ---- Path 1: small single resident block (optimal 1R + 1W, no pipeline) --
    # need: in + out + f32 upcast temporaries.
    small_need = 2 * n * f * isz + 2 * n * f * 4 + (1 << 20)
    if tile_f is None and tile_n is None and small_need <= min(4 << 20, budget):
        if packable:
            rows = n // k
            xp = x2d.reshape(rows, 128)
            gp = jnp.tile(gamma, (k,)).reshape(1, 128)
            bp = jnp.tile(beta, (k,)).reshape(1, 128)
            out = pl.pallas_call(
                functools.partial(_bn_packed_kernel, n_rows=n, feat=f, groups=k),
                out_shape=jax.ShapeDtypeStruct((rows, 128), x.dtype),
                in_specs=[pl.BlockSpec((rows, 128), lambda: (0, 0)),
                          pl.BlockSpec((1, 128), lambda: (0, 0)),
                          pl.BlockSpec((1, 128), lambda: (0, 0))],
                out_specs=pl.BlockSpec((rows, 128), lambda: (0, 0)),
                compiler_params=_cparams(hw_limit),
            )(xp, gp, bp)
            return out.reshape(s1, s2, f)
        out = pl.pallas_call(
            functools.partial(_bn_col_kernel, n_rows=n),
            out_shape=jax.ShapeDtypeStruct((n, f), x.dtype),
            in_specs=[pl.BlockSpec((n, f), lambda: (0, 0)),
                      pl.BlockSpec((1, f), lambda: (0, 0)),
                      pl.BlockSpec((1, f), lambda: (0, 0))],
            out_specs=pl.BlockSpec((n, f), lambda: (0, 0)),
            compiler_params=_cparams(hw_limit),
        )(x2d, gamma.reshape(1, f), beta.reshape(1, f))
        return out.reshape(s1, s2, f)

    # ---- Path 2: single pass, full-N column per block, pipelined over F tiles.
    if not packable and f >= 256:
        if tile_f is not None:
            cands = ([tile_f] if tile_f <= f and (tile_f % 128 == 0 or tile_f == f)
                     else [])
        else:
            cands = [t for t in (512, 256, 128) if t <= f]
            c4 = [t for t in cands if pl.cdiv(f, t) >= 4]
            c2 = [t for t in cands if pl.cdiv(f, t) >= 2]
            cands = c4 or c2 or cands
        for tf_ in cands:
            if pl.cdiv(f, tf_) < 2:
                continue                          # 1-step grid => no pipelining
            # in + out double-buffered + f32 upcast temporaries.
            need = 4 * n * tf_ * isz + 2 * n * tf_ * 4 + (1 << 20)
            if need > budget:
                continue
            out = pl.pallas_call(
                functools.partial(_bn_col_kernel, n_rows=n),
                out_shape=jax.ShapeDtypeStruct((n, f), x.dtype),
                grid=(pl.cdiv(f, tf_),),
                in_specs=[pl.BlockSpec((n, tf_), lambda j: (0, j)),
                          pl.BlockSpec((1, tf_), lambda j: (0, j)),
                          pl.BlockSpec((1, tf_), lambda j: (0, j))],
                out_specs=pl.BlockSpec((n, tf_), lambda j: (0, j)),
                compiler_params=_cparams(
                    hw_limit, dimension_semantics=("parallel",)),
            )(x2d, gamma.reshape(1, f), beta.reshape(1, f))
            return out.reshape(s1, s2, f)

    # ---- Path 3: two-pass (stats over tiled rows, then fused apply). ---------
    if packable:
        rows, fw = n // k, 128                    # lane-packed working layout
        xw = x2d.reshape(rows, fw)
    else:
        rows, fw = n, f
        xw = x2d

    # Feature tile.
    if tile_f is not None and tile_f < fw:
        tf_ = max(128, _round_up(tile_f, 128))
        if tf_ >= fw:
            tf_ = fw
    else:
        tf_ = fw if fw <= 512 else 512
    nf = pl.cdiv(fw, tf_)

    # Row tile: biggest that fits (double-buffered in/out + f32 temporaries).
    def _need(tn):
        return 4 * tn * tf_ * isz + 2 * tn * tf_ * 4 + (2 << 20)
    if tile_n is not None:
        tn_ = max(sub, _round_up(tile_n, sub))
    else:
        tn_ = sub
        for cand in (4096, 2048, 1024, 512, 256, 128, 64, 32, 16, 8):
            if cand % sub == 0 and _need(cand) <= budget:
                tn_ = cand
                break
    if tn_ >= rows:
        tn_ = rows                                # full dim: always legal block
    nn = pl.cdiv(rows, tn_)
    mask_rows = (nn * tn_ != rows)

    sums, sqs = pl.pallas_call(
        functools.partial(_bn_stats_kernel, rows_total=rows, tile_rows=tn_,
                          mask_rows=mask_rows),
        out_shape=(jax.ShapeDtypeStruct((1, fw), jnp.float32),
                   jax.ShapeDtypeStruct((1, fw), jnp.float32)),
        grid=(nf, nn),
        in_specs=[pl.BlockSpec((tn_, tf_), lambda jf, jn: (jn, jf))],
        out_specs=[pl.BlockSpec((1, tf_), lambda jf, jn: (0, jf)),
                   pl.BlockSpec((1, tf_), lambda jf, jn: (0, jf))],
        compiler_params=_cparams(
            hw_limit, dimension_semantics=("parallel", "arbitrary")),
    )(xw)

    # O(F) prep in plain JAX: fused per-feature scale / shift.
    if packable:
        sums = jnp.sum(sums.reshape(k, f), axis=0, keepdims=True)
        sqs = jnp.sum(sqs.reshape(k, f), axis=0, keepdims=True)
    mean = sums / n
    var = jnp.maximum(sqs / n - mean * mean, 0.0)
    inv_std = jax.lax.rsqrt(var + EPS)
    scale = gamma.astype(jnp.float32).reshape(1, f) * inv_std
    shift = beta.astype(jnp.float32).reshape(1, f) - mean * scale
    if packable:
        scale = jnp.tile(scale, (1, k))
        shift = jnp.tile(shift, (1, k))

    out = pl.pallas_call(
        _bn_apply_kernel,
        out_shape=jax.ShapeDtypeStruct((rows, fw), x.dtype),
        grid=(nn, nf),
        in_specs=[pl.BlockSpec((tn_, tf_), lambda i, j: (i, j)),
                  pl.BlockSpec((1, tf_), lambda i, j: (0, j)),
                  pl.BlockSpec((1, tf_), lambda i, j: (0, j))],
        out_specs=pl.BlockSpec((tn_, tf_), lambda i, j: (i, j)),
        compiler_params=_cparams(
            hw_limit, dimension_semantics=("parallel", "parallel")),
    )(xw, scale, shift)
    return out.reshape(s1, s2, f)


def batch_norm_point_ref(x, gamma, beta):
    """Pure-JAX reference of PyTorch training-mode BatchNorm1d semantics."""
    s1, s2, f = x.shape
    x2d = x.reshape(s1 * s2, f).astype(jnp.float32)
    mean = jnp.mean(x2d, axis=0, keepdims=True)
    var = jnp.mean((x2d - mean) ** 2, axis=0, keepdims=True)
    y = (x2d - mean) / jnp.sqrt(var + EPS) * gamma[None, :] + beta[None, :]
    return y.reshape(s1, s2, f).astype(x.dtype)


if __name__ == "__main__":
    key = jax.random.PRNGKey(0)

    def run_case(seed_key, s1, s2, feat, **kw):
        kx, kg, kb = jax.random.split(seed_key, 3)
        x = jax.random.normal(kx, (s1, s2, feat), dtype=jnp.float32)
        gamma = 1.0 + 0.1 * jax.random.normal(kg, (feat,), dtype=jnp.float32)
        beta = 0.1 * jax.random.normal(kb, (feat,), dtype=jnp.float32)
        out = jax.block_until_ready(batch_norm_point(x, gamma, beta, **kw))
        ref = batch_norm_point_ref(x, gamma, beta)
        assert out.shape == (s1, s2, feat)
        assert jnp.allclose(out, ref, atol=1e-4, rtol=1e-4)

    k0, k1, k2, k3, k4, k5 = jax.random.split(key, 6)
    # Path 1a: lane-packed single resident block (feat=32 folded into 128 lanes).
    run_case(k0, 2, 8, 32)
    # Path 1b: plain single resident block (small, feat not lane-packable).
    run_case(k1, 3, 5, 160)
    # Path 2: feature-tiled pipelined grid (explicit tile_f, 2 steps).
    run_case(k2, 4, 8, 256, tile_f=128)
    # Path 2: default candidate logic (>=4 feature-tile steps).
    run_case(k3, 2, 64, 512, vmem_budget_bytes=2 << 20)
    # Path 3: two-pass stats + apply, forced via a tiny selection budget.
    run_case(k4, 8, 16, 256, tile_f=128, tile_n=32, vmem_budget_bytes=1 << 12)
    # Path 3 with ragged row blocks (n=63 not divisible by tile_n -> in-kernel mask).
    run_case(k5, 7, 9, 256, tile_f=128, tile_n=16, vmem_budget_bytes=1 << 12)

    print("KERNEL_OK")
</pallas_src>

<mosaic_0001>
module attributes {stable_mosaic.version = 11 : i64} {
  func.func @_bn_packed_kernel(%arg0: memref<4x128xf32, #tpu.memory_space<vmem>>, %arg1: memref<1x128xf32, #tpu.memory_space<vmem>>, %arg2: memref<1x128xf32, #tpu.memory_space<vmem>>, %arg3: memref<4x128xf32, #tpu.memory_space<vmem>>) attributes {dimension_semantics = [], scalar_prefetch = 0 : i64, scratch_operands = 0 : i64, tpu.core_type = #tpu.core_type<tc>} {
    %c0 = arith.constant 0 : index
    %c0_0 = arith.constant 0 : index
    %0 = vector.load %arg0[%c0, %c0_0] : memref<4x128xf32, #tpu.memory_space<vmem>>, vector<4x128xf32>
    %cst = arith.constant dense<0.000000e+00> : vector<128xf32>
    %1 = vector.multi_reduction <add>, %0, %cst [0] : vector<4x128xf32> to vector<128xf32>
    %2 = vector.shape_cast %1 : vector<128xf32> to vector<1x128xf32>
    %3 = arith.mulf %0, %0 : vector<4x128xf32>
    %cst_1 = arith.constant dense<0.000000e+00> : vector<128xf32>
    %4 = vector.multi_reduction <add>, %3, %cst_1 [0] : vector<4x128xf32> to vector<128xf32>
    %5 = vector.shape_cast %4 : vector<128xf32> to vector<1x128xf32>
    %c32_i32 = arith.constant 32 : i32
    %6 = tpu.dynamic_rotate %2 by %c32_i32 dim 1 : vector<1x128xf32>, i32 -> vector<1x128xf32>
    %7 = arith.addf %2, %6 : vector<1x128xf32>
    %c32_i32_2 = arith.constant 32 : i32
    %8 = tpu.dynamic_rotate %5 by %c32_i32_2 dim 1 : vector<1x128xf32>, i32 -> vector<1x128xf32>
    %9 = arith.addf %5, %8 : vector<1x128xf32>
    %c64_i32 = arith.constant 64 : i32
    %10 = tpu.dynamic_rotate %7 by %c64_i32 dim 1 : vector<1x128xf32>, i32 -> vector<1x128xf32>
    %11 = arith.addf %7, %10 : vector<1x128xf32>
    %c64_i32_3 = arith.constant 64 : i32
    %12 = tpu.dynamic_rotate %9 by %c64_i32_3 dim 1 : vector<1x128xf32>, i32 -> vector<1x128xf32>
    %13 = arith.addf %9, %12 : vector<1x128xf32>
    %cst_4 = arith.constant 6.250000e-02 : f32
    %14 = vector.broadcast %cst_4 : f32 to vector<1x128xf32>
    %15 = arith.mulf %11, %14 : vector<1x128xf32>
    %cst_5 = arith.constant 6.250000e-02 : f32
    %16 = vector.broadcast %cst_5 : f32 to vector<1x128xf32>
    %17 = arith.mulf %13, %16 : vector<1x128xf32>
    %18 = arith.mulf %15, %15 : vector<1x128xf32>
    %19 = arith.subf %17, %18 : vector<1x128xf32>
    %cst_6 = arith.constant 0.000000e+00 : f32
    %20 = vector.broadcast %cst_6 : f32 to vector<1x128xf32>
    %21 = arith.maximumf %19, %20 : vector<1x128xf32>
    %cst_7 = arith.constant 9.99999974E-6 : f32
    %22 = vector.broadcast %cst_7 : f32 to vector<1x128xf32>
    %23 = arith.addf %21, %22 : vector<1x128xf32>
    %24 = math.rsqrt %23 : vector<1x128xf32>
    %c0_8 = arith.constant 0 : index
    %c0_9 = arith.constant 0 : index
    %25 = vector.load %arg1[%c0_8, %c0_9] : memref<1x128xf32, #tpu.memory_space<vmem>>, vector<1x128xf32>
    %26 = arith.mulf %25, %24 : vector<1x128xf32>
    %c0_10 = arith.constant 0 : index
    %c0_11 = arith.constant 0 : index
    %27 = vector.load %arg2[%c0_10, %c0_11] : memref<1x128xf32, #tpu.memory_space<vmem>>, vector<1x128xf32>
    %28 = arith.mulf %15, %26 : vector<1x128xf32>
    %29 = arith.subf %27, %28 : vector<1x128xf32>
    %30 = vector.broadcast %26 : vector<1x128xf32> to vector<4x128xf32>
    %31 = arith.mulf %0, %30 : vector<4x128xf32>
    %32 = vector.broadcast %29 : vector<1x128xf32> to vector<4x128xf32>
    %33 = arith.addf %31, %32 : vector<4x128xf32>
    %c0_12 = arith.constant 0 : index
    %c0_13 = arith.constant 0 : index
    %34 = vector.load %arg3[%c0_12, %c0_13] : memref<4x128xf32, #tpu.memory_space<vmem>>, vector<4x128xf32>
    tpu.vector_store %arg3[%c0_12, %c0_13], %33 {strides = array<i32>} : memref<4x128xf32, #tpu.memory_space<vmem>>, vector<4x128xf32>,
    return
  }
}

</mosaic_0001>

<llo_original>
// kernel: tpu_custom_call.1
$region0: #{tpu_custom_call.1}
  #allocation0 [shape = 'u32[]', space=smem, size = 0x4, offset = 0x4, fixed_abs, tag = 'smem constant byte address 0x4 - core index']
  #allocation1 [shape = 'u32[72,128]{1,0:T(1,128)}', space=vmem, size = 0x9000, scoped, tag = 'internal scratch']
  %s0 = inlined_call_operand.hbm [shape: f32[4,128], index: 0, kind: input, shape index: {}]
  %s1 = inlined_call_operand.hbm [shape: f32[1,128], index: 1, kind: input, shape index: {}]
  %s2 = inlined_call_operand.vmem [shape: f32[1,128], index: 2, kind: input, shape index: {}]
  %s3 = inlined_call_operand.hbm [shape: f32[4,128], index: 3, kind: output, shape index: {}]
  %s4 = sld [smem:[#allocation0]]
  $region30: #{tpu_custom_call.1} parent=0
    _
  %s6 = ssub.s32 1, %s4
  %s7 = scalar_select 0, %s6, %s4
  $region1: #{tpu_custom_call.1} parent=0
    #allocation2 [shape = 'u8[2048]{0}', space=vmem, size = 0x800, scoped, tag = 'input window, operand 0, single buffered']
    #allocation3 [shape = 's32[1]{0}', space=sflag, size = 0x4, scoped, tag = 'scoped memory for tpu_custom_call.1']
    #allocation4 [shape = 's32[1]{0}', space=sflag, size = 0x4, scoped, tag = 'scoped memory for tpu_custom_call.1']
    #allocation5 [shape = 'u8[512]{0}', space=vmem, size = 0x400, scoped, tag = 'input window, operand 1, single buffered']
    #allocation6 [shape = 's32[1]{0}', space=sflag, size = 0x4, scoped, tag = 'scoped memory for tpu_custom_call.1']
    #allocation7 [shape = 'u8[2048]{0}', space=vmem, size = 0x800, scoped, tag = 'output window, operand 0, single buffered']
    %8 = vsyncpa [#allocation3], 0
    %9 = vsyncpa [#allocation6], 0
    %10 = vsyncpa [#allocation4], 0
    // Predicated region
    $region2: #{tpu_custom_call.1} parent=1 // pred_check
      _
    $region3: #{tpu_custom_call.1} parent=1 // pred_check_branch
      %12 = sbr.rel (0) target = $region5
    $region4: #{tpu_custom_call.1} parent=1 // pred_region
      %14 = vsyncadd [#allocation3], 0
      %s16 = sshll.u32 %s0, 4
      %s17 = int_to_ptr.hbm [resolvable:$true] %s16
      %s18 = sshll.u32 [#allocation2], 4
      %s19 = int_to_ptr.vmem [resolvable:$true] %s18
      %21 = dma.hbm_to_vmem [thread:$0]  %s17, 64, %s19, [#allocation3]
    $region5: #{tpu_custom_call.1} parent=1 // pred_fallthru
      _
    // Predicated region
    $region6: #{tpu_custom_call.1} parent=1 // pred_check
      _
    $region7: #{tpu_custom_call.1} parent=1 // pred_check_branch
      %23 = sbr.rel (0) target = $region9
    $region8: #{tpu_custom_call.1} parent=1 // pred_region
      %25 = vsyncadd [#allocation6], 0
      %s27 = sshll.u32 %s1, 4
      %s28 = int_to_ptr.hbm [resolvable:$true] %s27
      %s29 = sshll.u32 [#allocation5], 4
      %s30 = int_to_ptr.vmem [resolvable:$true] %s29
      %32 = dma.hbm_to_vmem [thread:$0]  %s28, 16, %s30, [#allocation6]
    $region9: #{tpu_custom_call.1} parent=1 // pred_fallthru
      _
    // Predicated region
    $region10: #{tpu_custom_call.1} parent=1 // pred_check
      _
    $region11: #{tpu_custom_call.1} parent=1 // pred_check_branch
      %34 = sbr.rel (0) target = $region13
    $region12: #{tpu_custom_call.1} parent=1 // pred_region
      _
    $region13: #{tpu_custom_call.1} parent=1 // pred_fallthru
      _
    // Predicated region
    $region14: #{tpu_custom_call.1} parent=1 // pred_check
      _
    $region15: #{tpu_custom_call.1} parent=1 // pred_check_branch
      %36 = sbr.rel (0) target = $region17
    $region16: #{tpu_custom_call.1} parent=1 // pred_region
      %38 = dma.done [#allocation3], 64
    $region17: #{tpu_custom_call.1} parent=1 // pred_fallthru
      _
    // Predicated region
    $region18: #{tpu_custom_call.1} parent=1 // pred_check
      _
    $region19: #{tpu_custom_call.1} parent=1 // pred_check_branch
      %40 = sbr.rel (0) target = $region21
    $region20: #{tpu_custom_call.1} parent=1 // pred_region
      %42 = dma.done [#allocation6], 16
    $region21: #{tpu_custom_call.1} parent=1 // pred_fallthru
      _
    %v43 = vld [vmem:[#allocation2] sm:$0xf]
    %vm44 = vcmask 1043456
    %v45 = vsel %vm44, %v43, 0.0
    %v46 = vrot.slane %v45, 4
    %v47 = vadd.f32 %v45, %v46
    %v48 = vrot.slane %v47, 2
    %v49 = vadd.f32 %v47, %v48
    %v50 = vrot.slane %v49, 1
    %v51 = vadd.f32 %v49, %v50
    %v52 = vmul.f32 %v43, %v43
    %v53 = vsel %vm44, %v52, 0.0
    %v54 = vrot.slane %v53, 4
    %v55 = vadd.f32 %v53, %v54
    %v56 = vrot.slane %v55, 2
    %v57 = vadd.f32 %v55, %v56
    %v58 = vrot.slane %v57, 1
    %v59 = vadd.f32 %v57, %v58
    %60 = vrot.lane.b32.xlu0 %v51, 32
    %v61 = vpop.permute.xlu0 %60
    %v62 = vadd.f32 %v51, %v61
    %63 = vrot.lane.b32.xlu0 %v59, 32
    %v64 = vpop.permute.xlu0 %63
    %v65 = vadd.f32 %v59, %v64
    %66 = vrot.lane.b32.xlu0 %v62, 64
    %v67 = vpop.permute.xlu0 %66
    %v68 = vadd.f32 %v62, %v67
    %69 = vrot.lane.b32.xlu0 %v65, 64
    %v70 = vpop.permute.xlu0 %69
    %v71 = vadd.f32 %v65, %v70
    %v72 = vmul.f32 %v68, 0.0625
    %v73 = vmul.f32 %v71, 0.0625
    %v74 = vmul.f32 %v72, %v72
    %v75 = vsub.f32 %v73, %v74
    %v76 = vmax.f32 %v75, 0.0
    %v77 = vadd.f32 %v76, 1e-05
    %v78 = vrsqrt.pop %v77
    %v79 = vmul.f32 %v78, %v77
    %v80 = vmul.f32 %v79, %v78
    %v81 = vmul.f32 0.5, %v80
    %v82 = vsub.f32 1.5, %v81
    %v83 = vmul.f32 %v78, %v82
    %vm84 = vweird.f32 %v77
    %vm85 = vweird.f32 %v78
    %vm86 = vmor %vm84, %vm85
    %v87 = vsel %vm86, %v78, %v83
    %v88 = vld [vmem:[#allocation5] sm:$0x1]
    %v89 = vmul.f32 %v88, %v87
    %v90 = vld [vmem:[%s2] sm:$0x1]
    %v91 = vmul.f32 %v72, %v89
    %v92 = vsub.f32 %v90, %v91
    %v94 = vperm.slane %v89, 0
    %v96 = vmul.f32 %v43, %v94
    %v98 = vperm.slane %v92, 0
    %v100 = vadd.f32 %v96, %v98
    %101 = vst [vmem:[#allocation7] sm:$0xf] %v100
    // Predicated region
    $region22: #{tpu_custom_call.1} parent=1 // pred_check
      _
    $region23: #{tpu_custom_call.1} parent=1 // pred_check_branch
      %103 = sbr.rel (0) target = $region25
    $region24: #{tpu_custom_call.1} parent=1 // pred_region
      %105 = vsyncadd [#allocation4], 0
      %s107 = sshll.u32 [#allocation7], 4
      %s108 = int_to_ptr.vmem [resolvable:$true] %s107
      %s109 = sshll.u32 %s3, 4
      %s110 = int_to_ptr.hbm [resolvable:$true] %s109
      %112 = dma.vmem_to_hbm [thread:$0]  %s108, 64, %s110, [#allocation4]
    $region25: #{tpu_custom_call.1} parent=1 // pred_fallthru
      _
    // Predicated region
    $region26: #{tpu_custom_call.1} parent=1 // pred_check
      _
    $region27: #{tpu_custom_call.1} parent=1 // pred_check_branch
      %114 = sbr.rel (0) target = $region29
    $region28: #{tpu_custom_call.1} parent=1 // pred_region
      %116 = dma.done [#allocation4], 64
    $region29: #{tpu_custom_call.1} parent=1 // pred_fallthru
      _
    %117 = vsyncpa [#allocation3], 1
    %118 = vsyncpa [#allocation6], 1
    %119 = vsyncpa [#allocation4], 1

</llo_original>
